<compile_context>
chip_gen: v5e
topology: v5e:2x2
jax: 0.10.0
libtpu: 0.0.40
codegen_flags: <defaults>
</compile_context>

<pallas_src>
import math

import jax
import jax.numpy as jnp
import numpy as np
from jax.experimental import pallas as pl
from jax.experimental.pallas import tpu as pltpu

TRIP_COLS = ['tod', 'road', 'road_prop', 'lng', 'lat', 'weekday', 'seq_i',
             'seconds', 'speed', 'acceleration', 'heading_angle', 'road_type',
             'lanes', 'direction']
NUM_FEATS = len(TRIP_COLS)  # 14

_LANE = 128


def _round_up(x, m):
    return (x + m - 1) // m * m


def _normalize_kernel(x_ref, scale_ref, shift_ref, o_ref):
    # x_ref / o_ref : (tr, LW) row tile, feature-periodic along lanes.
    # scale_ref / shift_ref : (1, LW) resident float32 constants (constant
    # index_map); the row broadcast is a sublane splat.
    x = x_ref[...].astype(jnp.float32)
    o_ref[...] = (x * scale_ref[...] + shift_ref[...]).astype(o_ref.dtype)


def _affine_tail(x_tail_flat, scale_f32, shift_f32, dtype):
    """XLA epilogue for a short (< lane_width), feature-phase-0 tail."""
    t = x_tail_flat.shape[0]
    feat = scale_f32.shape[0]
    reps = -(-t // feat)
    sc = jnp.tile(scale_f32, reps)[:t]
    sh = jnp.tile(shift_f32, reps)[:t]
    return (x_tail_flat.astype(jnp.float32) * sc + sh).astype(dtype)


def normalizer_forward(x, scale, shift, *, rows_per_tile=1024,
                       buffer_depth=2, donate_input=False):
    """out[..., c] = x[..., c] * scale[c] + shift[c] over the last axis.

    x: (..., F) array; scale / shift: (F,) arrays (kept in float32).
    """
    orig_shape = x.shape
    feat = orig_shape[-1]
    dtype = x.dtype

    scale_f32 = jnp.asarray(scale, jnp.float32)
    shift_f32 = jnp.asarray(shift, jnp.float32)

    # Lane-dense minor axis: lcm(F, 128) elements per "wide row".
    repeat = _LANE // math.gcd(feat, _LANE)        # 64 for F=14
    lane_width = feat * repeat                     # 896 for F=14

    n_elems = int(np.prod(orig_shape))
    rows = n_elems // lane_width
    tail_elems = n_elems - rows * lane_width

    # Tensor smaller than one wide row: trivial XLA epilogue only.
    if rows == 0:
        out_flat = _affine_tail(x.reshape(-1), scale_f32, shift_f32, dtype)
        return out_flat.reshape(orig_shape)

    # dtype-dependent sublane packing: 8 rows (f32), 16 (bf16), 32 (int8).
    sub = 8 * max(1, 4 // np.dtype(dtype).itemsize)
    tr_cap = _round_up(rows_per_tile, sub)
    # Small inputs: one exact block (block_shape == array dims, always legal).
    # Large inputs: big sub-multiple tiles; Pallas masks the trailing partial
    # block, so no host-side padding is ever needed.
    tr = rows if rows <= tr_cap else tr_cap
    grid = pl.cdiv(rows, tr)

    if tail_elems == 0:
        # Fast path: reshape is a bitcast -> zero extra HBM traffic.
        x2d = x.reshape(rows, lane_width)
        x_flat = None
    else:
        # Ragged path: kernel on the 896-aligned prefix, XLA epilogue on the
        # tail.  The prefix slice / final concatenate each cost one extra
        # pass; callers should keep prod(leading dims) % 64 == 0 to stay on
        # the copy-free fast path.
        x_flat = x.reshape(-1)
        x2d = x_flat[:rows * lane_width].reshape(rows, lane_width)

    scale_row = jnp.tile(scale_f32, repeat).reshape(1, lane_width)
    shift_row = jnp.tile(shift_f32, repeat).reshape(1, lane_width)

    spec_kwargs = {}
    if buffer_depth is not None and buffer_depth != 2:
        # v7x-only knob: 3-deep buffering if xprof shows exposed DMA.
        spec_kwargs["pipeline_mode"] = pl.Buffered(buffer_depth)
    row_spec = pl.BlockSpec((tr, lane_width), lambda i: (i, 0), **spec_kwargs)
    const_spec = pl.BlockSpec((1, lane_width), lambda i: (0, 0))

    out2d = pl.pallas_call(
        _normalize_kernel,
        out_shape=jax.ShapeDtypeStruct((rows, lane_width), dtype),
        grid=(grid,),
        in_specs=[row_spec, const_spec, const_spec],
        out_specs=row_spec,
        input_output_aliases={0: 0} if donate_input else {},
        compiler_params=pltpu.CompilerParams(
            dimension_semantics=("parallel",),   # v7x: split rows across 2 TCs
            vmem_limit_bytes=32 << 20,           # fits v7x's 64 MiB VMEM easily
        ),
    )(x2d, scale_row, shift_row)

    if tail_elems == 0:
        return out2d.reshape(orig_shape)

    tail_out = _affine_tail(x_flat[rows * lane_width:], scale_f32, shift_f32,
                            dtype)
    return jnp.concatenate([out2d.reshape(-1), tail_out]).reshape(orig_shape)


def build_scale_shift(stat, feat_cols, feat_names, norm_type="zscore"):
    """Fold the Normalizer's per-column stats into affine (scale, shift).

    stat: dict name -> {'mean','std','min','max'} (stand-in for the pandas
    DataFrame the original module receives).  Unselected columns keep
    scale=1, shift=0 (identity == copy-through).  Always float32.
    """
    scale = np.ones((NUM_FEATS,), dtype=np.float32)
    shift = np.zeros((NUM_FEATS,), dtype=np.float32)
    for col, name in zip(feat_cols, feat_names):
        s = stat[name]
        if norm_type == "zscore":
            if s["std"] == 0:
                raise ValueError(f"std == 0 for column {name!r}")
            scale[col] = 1.0 / s["std"]
            shift[col] = -s["mean"] / s["std"]
        elif norm_type == "minmax":
            rng = s["max"] - s["min"]
            if rng == 0:
                raise ValueError(f"max == min for column {name!r}")
            scale[col] = 2.0 / rng
            shift[col] = -2.0 * s["min"] / rng - 1.0
        else:
            raise NotImplementedError(norm_type)
    return jnp.asarray(scale), jnp.asarray(shift)


if __name__ == "__main__":
    # Deterministic synthetic stats (the module's __init__ takes a pandas
    # DataFrame with rows 'mean','std','min','max' indexed by column name).
    feat_cols = [3, 4, 8, 9, 10]              # lng, lat, speed, accel, heading
    feat_names = [TRIP_COLS[c] for c in feat_cols]
    stat = {}
    for i, name in enumerate(feat_names):
        stat[name] = {
            "mean": 0.5 * (i + 1),
            "std": 1.0 + 0.25 * i,
            "min": -1.0 - i,
            "max": 2.0 + i,
        }

    def ref_zscore(x_np):
        r = np.array(x_np, dtype=np.float32)
        for col, name in zip(feat_cols, feat_names):
            r[..., col] = (r[..., col] - stat[name]["mean"]) / stat[name]["std"]
        return r

    def ref_minmax(x_np):
        r = np.array(x_np, dtype=np.float32)
        for col, name in zip(feat_cols, feat_names):
            lo, hi = stat[name]["min"], stat[name]["max"]
            r[..., col] = (r[..., col] - lo) / (hi - lo) * 2.0 - 1.0
        return r

    key = jax.random.PRNGKey(0)
    scale_z, shift_z = build_scale_shift(stat, feat_cols, feat_names, "zscore")
    scale_m, shift_m = build_scale_shift(stat, feat_cols, feat_names, "minmax")

    # --- Test 1: zscore, aligned fast path (B*S=512 -> 8 wide rows, no copies)
    x1 = jax.random.normal(key, (2, 256, NUM_FEATS), jnp.float32) * 3.0 + 1.0
    out1 = jax.block_until_ready(normalizer_forward(x1, scale_z, shift_z))
    np.testing.assert_allclose(np.array(out1), ref_zscore(x1),
                               rtol=1e-5, atol=1e-5)

    # --- Test 2: minmax, ragged path (B*S=80 -> 1 aligned row + 224-elem tail)
    x2 = jax.random.normal(jax.random.fold_in(key, 1),
                           (2, 40, NUM_FEATS), jnp.float32) * 2.0
    out2 = jax.block_until_ready(normalizer_forward(x2, scale_m, shift_m))
    np.testing.assert_allclose(np.array(out2), ref_minmax(x2),
                               rtol=1e-5, atol=1e-5)

    # --- Test 3: zscore, multi-step grid with a partial trailing block.
    # rows_per_tile=8 is a correctness-only setting to exercise block masking
    # at small test shapes; production keeps the large default (1024).
    x3 = jax.random.normal(jax.random.fold_in(key, 2),
                           (2, 640, NUM_FEATS), jnp.float32)
    out3 = jax.block_until_ready(
        normalizer_forward(x3, scale_z, shift_z, rows_per_tile=8))
    np.testing.assert_allclose(np.array(out3), ref_zscore(x3),
                               rtol=1e-5, atol=1e-5)

    # --- Test 4: bf16 I/O (f32 FMA in-kernel, cast on store) + donated input.
    x4 = (jax.random.normal(jax.random.fold_in(key, 3),
                            (2, 256, NUM_FEATS), jnp.float32) * 3.0 + 1.0
          ).astype(jnp.bfloat16)
    x4_np = np.array(x4, dtype=np.float32)          # snapshot before donation
    out4 = jax.block_until_ready(
        normalizer_forward(x4, scale_z, shift_z, donate_input=True))
    np.testing.assert_allclose(np.array(out4, dtype=np.float32),
                               ref_zscore(x4_np), rtol=2e-2, atol=2e-2)

    print("KERNEL_OK")
</pallas_src>

<mosaic_0001>
module attributes {stable_mosaic.version = 11 : i64} {
  func.func @_normalize_kernel(%arg0: i32, %arg1: memref<8x896xf32, #tpu.memory_space<vmem>>, %arg2: memref<1x896xf32, #tpu.memory_space<vmem>>, %arg3: memref<1x896xf32, #tpu.memory_space<vmem>>, %arg4: memref<8x896xf32, #tpu.memory_space<vmem>>) attributes {dimension_semantics = [#tpu.dimension_semantics<parallel>], iteration_bounds = array<i64: 1>, scalar_prefetch = 0 : i64, scratch_operands = 0 : i64, tpu.core_type = #tpu.core_type<tc>, window_params = [{transform_indices = @transform_0, window_bounds = array<i64: 8, 896>}, {pipeline_mode = #tpu.pipeline_mode<synchronous>, transform_indices = @transform_1, window_bounds = array<i64: 1, 896>}, {pipeline_mode = #tpu.pipeline_mode<synchronous>, transform_indices = @transform_2, window_bounds = array<i64: 1, 896>}, {transform_indices = @transform_3, window_bounds = array<i64: 8, 896>}]} {
    %c0 = arith.constant 0 : index
    %c0_0 = arith.constant 0 : index
    %0 = vector.load %arg1[%c0, %c0_0] : memref<8x896xf32, #tpu.memory_space<vmem>>, vector<8x896xf32>
    %c0_1 = arith.constant 0 : index
    %c0_2 = arith.constant 0 : index
    %1 = vector.load %arg2[%c0_1, %c0_2] : memref<1x896xf32, #tpu.memory_space<vmem>>, vector<1x896xf32>
    %2 = vector.broadcast %1 : vector<1x896xf32> to vector<8x896xf32>
    %3 = arith.mulf %0, %2 : vector<8x896xf32>
    %c0_3 = arith.constant 0 : index
    %c0_4 = arith.constant 0 : index
    %4 = vector.load %arg3[%c0_3, %c0_4] : memref<1x896xf32, #tpu.memory_space<vmem>>, vector<1x896xf32>
    %5 = vector.broadcast %4 : vector<1x896xf32> to vector<8x896xf32>
    %6 = arith.addf %3, %5 : vector<8x896xf32>
    %c0_5 = arith.constant 0 : index
    %c0_6 = arith.constant 0 : index
    %7 = vector.load %arg4[%c0_5, %c0_6] : memref<8x896xf32, #tpu.memory_space<vmem>>, vector<8x896xf32>
    tpu.vector_store %arg4[%c0_5, %c0_6], %6 {strides = array<i32>} : memref<8x896xf32, #tpu.memory_space<vmem>>, vector<8x896xf32>,
    return
  }
  func.func @transform_0(%arg0: i32) -> (i32, i32) {
    %c0_i32 = arith.constant 0 : i32
    %c0_i32_0 = arith.constant 0 : i32
    return %arg0, %c0_i32 : i32, i32
  }
  func.func @transform_1(%arg0: i32) -> (i32, i32) {
    %c0_i32 = arith.constant 0 : i32
    %c0_i32_0 = arith.constant 0 : i32
    %c0_i32_1 = arith.constant 0 : i32
    return %c0_i32, %c0_i32_0 : i32, i32
  }
  func.func @transform_2(%arg0: i32) -> (i32, i32) {
    %c0_i32 = arith.constant 0 : i32
    %c0_i32_0 = arith.constant 0 : i32
    %c0_i32_1 = arith.constant 0 : i32
    return %c0_i32, %c0_i32_0 : i32, i32
  }
  func.func @transform_3(%arg0: i32) -> (i32, i32) {
    %c0_i32 = arith.constant 0 : i32
    %c0_i32_0 = arith.constant 0 : i32
    return %arg0, %c0_i32 : i32, i32
  }
}

</mosaic_0001>

<llo_original>
// kernel: tpu_custom_call.1
$region0: #{tpu_custom_call.1}
  #allocation0 [shape = 'u32[]', space=smem, size = 0x4, offset = 0x4, fixed_abs, tag = 'smem constant byte address 0x4 - core index']
  #allocation1 [shape = 'u32[72,128]{1,0:T(1,128)}', space=vmem, size = 0x9000, scoped, tag = 'internal scratch']
  %s0 = inlined_call_operand.hbm [shape: f32[8,896], index: 0, kind: input, shape index: {}]
  %s1 = inlined_call_operand.hbm [shape: f32[1,896], index: 1, kind: input, shape index: {}]
  %s2 = inlined_call_operand.hbm [shape: f32[1,896], index: 2, kind: input, shape index: {}]
  %s3 = inlined_call_operand.hbm [shape: f32[8,896], index: 3, kind: output, shape index: {}]
  %s4 = sld [smem:[#allocation0]]
  $region34: #{tpu_custom_call.1} parent=0
    _
  %s6 = ssub.s32 1, %s4
  %s7 = scalar_select 0, %s6, %s4
  $region1: #{tpu_custom_call.1} parent=0
    #allocation2 [shape = 'u8[28672]{0}', space=vmem, size = 0x7000, scoped, tag = 'input window, operand 0, single buffered']
    #allocation3 [shape = 's32[1]{0}', space=sflag, size = 0x4, scoped, tag = 'scoped memory for tpu_custom_call.1']
    #allocation4 [shape = 's32[1]{0}', space=sflag, size = 0x4, scoped, tag = 'scoped memory for tpu_custom_call.1']
    #allocation5 [shape = 'u8[3584]{0}', space=vmem, size = 0x1000, scoped, tag = 'input window, operand 1, single buffered']
    #allocation6 [shape = 's32[1]{0}', space=sflag, size = 0x4, scoped, tag = 'scoped memory for tpu_custom_call.1']
    #allocation7 [shape = 'u8[3584]{0}', space=vmem, size = 0x1000, scoped, tag = 'input window, operand 2, single buffered']
    #allocation8 [shape = 'u8[28672]{0}', space=vmem, size = 0x7000, scoped, tag = 'output window, operand 0, single buffered']
    %8 = vsyncpa [#allocation3], 0
    %9 = vsyncpa [#allocation6], 0
    %10 = vsyncpa [#allocation4], 0
    // Predicated region
    $region2: #{tpu_custom_call.1} parent=1 // pred_check
      _
    $region3: #{tpu_custom_call.1} parent=1 // pred_check_branch
      %12 = sbr.rel (0) target = $region5
    $region4: #{tpu_custom_call.1} parent=1 // pred_region
      %14 = vsyncadd [#allocation3], 0
      %s16 = sshll.u32 %s0, 4
      %s17 = int_to_ptr.hbm [resolvable:$true] %s16
      %s18 = sshll.u32 [#allocation2], 4
      %s19 = int_to_ptr.vmem [resolvable:$true] %s18
      %21 = dma.hbm_to_vmem [thread:$0]  %s17, 896, %s19, [#allocation3]
    $region5: #{tpu_custom_call.1} parent=1 // pred_fallthru
      _
    // Predicated region
    $region6: #{tpu_custom_call.1} parent=1 // pred_check
      _
    $region7: #{tpu_custom_call.1} parent=1 // pred_check_branch
      %23 = sbr.rel (0) target = $region9
    $region8: #{tpu_custom_call.1} parent=1 // pred_region
      %25 = vsyncadd [#allocation6], 0
      %s27 = sshll.u32 %s1, 4
      %s28 = int_to_ptr.hbm [resolvable:$true] %s27
      %s29 = sshll.u32 [#allocation5], 4
      %s30 = int_to_ptr.vmem [resolvable:$true] %s29
      %32 = dma.hbm_to_vmem [thread:$0]  %s28, 112, %s30, [#allocation6]
    $region9: #{tpu_custom_call.1} parent=1 // pred_fallthru
      _
    // Predicated region
    $region10: #{tpu_custom_call.1} parent=1 // pred_check
      _
    $region11: #{tpu_custom_call.1} parent=1 // pred_check_branch
      %34 = sbr.rel (0) target = $region13
    $region12: #{tpu_custom_call.1} parent=1 // pred_region
      %36 = vsyncadd [#allocation6], 0
      %s38 = sshll.u32 %s2, 4
      %s39 = int_to_ptr.hbm [resolvable:$true] %s38
      %s40 = sshll.u32 [#allocation7], 4
      %s41 = int_to_ptr.vmem [resolvable:$true] %s40
      %43 = dma.hbm_to_vmem [thread:$0]  %s39, 112, %s41, [#allocation6]
    $region13: #{tpu_custom_call.1} parent=1 // pred_fallthru
      _
    // Predicated region
    $region14: #{tpu_custom_call.1} parent=1 // pred_check
      _
    $region15: #{tpu_custom_call.1} parent=1 // pred_check_branch
      %45 = sbr.rel (0) target = $region17
    $region16: #{tpu_custom_call.1} parent=1 // pred_region
      %47 = dma.done [#allocation3], 896
    $region17: #{tpu_custom_call.1} parent=1 // pred_fallthru
      _
    // Predicated region
    $region18: #{tpu_custom_call.1} parent=1 // pred_check
      _
    $region19: #{tpu_custom_call.1} parent=1 // pred_check_branch
      %49 = sbr.rel (0) target = $region21
    $region20: #{tpu_custom_call.1} parent=1 // pred_region
      %51 = dma.done [#allocation6], 112
    $region21: #{tpu_custom_call.1} parent=1 // pred_fallthru
      _
    // Predicated region
    $region22: #{tpu_custom_call.1} parent=1 // pred_check
      _
    $region23: #{tpu_custom_call.1} parent=1 // pred_check_branch
      %53 = sbr.rel (0) target = $region25
    $region24: #{tpu_custom_call.1} parent=1 // pred_region
      %55 = dma.done [#allocation6], 112
    $region25: #{tpu_custom_call.1} parent=1 // pred_fallthru
      _
    %v56 = vld [vmem:[#allocation2] sm:$0xff]
    %v57 = vld [vmem:[#allocation2 + $0x8] sm:$0xff]
    %v58 = vld [vmem:[#allocation2 + $0x10] sm:$0xff]
    %v59 = vld [vmem:[#allocation2 + $0x18] sm:$0xff]
    %v60 = vld [vmem:[#allocation2 + $0x20] sm:$0xff]
    %v61 = vld [vmem:[#allocation2 + $0x28] sm:$0xff]
    %v62 = vld [vmem:[#allocation2 + $0x30] sm:$0xff]
    %v63 = vld [vmem:[#allocation5] sm:$0xff]
    %v65 = vperm.slane %v63, 0
    %v66 = vperm.slane %v63, 1
    %v67 = vperm.slane %v63, 2
    %v68 = vperm.slane %v63, 3
    %v69 = vperm.slane %v63, 4
    %v70 = vperm.slane %v63, 5
    %v71 = vperm.slane %v63, 6
    %v79 = vmul.f32 %v56, %v65
    %v80 = vmul.f32 %v57, %v66
    %v81 = vmul.f32 %v58, %v67
    %v82 = vmul.f32 %v59, %v68
    %v83 = vmul.f32 %v60, %v69
    %v84 = vmul.f32 %v61, %v70
    %v85 = vmul.f32 %v62, %v71
    %v86 = vld [vmem:[#allocation7] sm:$0xff]
    %v88 = vperm.slane %v86, 0
    %v89 = vperm.slane %v86, 1
    %v90 = vperm.slane %v86, 2
    %v91 = vperm.slane %v86, 3
    %v92 = vperm.slane %v86, 4
    %v93 = vperm.slane %v86, 5
    %v94 = vperm.slane %v86, 6
    %v102 = vadd.f32 %v79, %v88
    %v103 = vadd.f32 %v80, %v89
    %v104 = vadd.f32 %v81, %v90
    %v105 = vadd.f32 %v82, %v91
    %v106 = vadd.f32 %v83, %v92
    %v107 = vadd.f32 %v84, %v93
    %v108 = vadd.f32 %v85, %v94
    %109 = vst [vmem:[#allocation8] sm:$0xff] %v102
    %110 = vst [vmem:[#allocation8 + $0x8] sm:$0xff] %v103
    %111 = vst [vmem:[#allocation8 + $0x10] sm:$0xff] %v104
    %112 = vst [vmem:[#allocation8 + $0x18] sm:$0xff] %v105
    %113 = vst [vmem:[#allocation8 + $0x20] sm:$0xff] %v106
    %114 = vst [vmem:[#allocation8 + $0x28] sm:$0xff] %v107
    %115 = vst [vmem:[#allocation8 + $0x30] sm:$0xff] %v108
    // Predicated region
    $region26: #{tpu_custom_call.1} parent=1 // pred_check
      _
    $region27: #{tpu_custom_call.1} parent=1 // pred_check_branch
      %117 = sbr.rel (0) target = $region29
    $region28: #{tpu_custom_call.1} parent=1 // pred_region
      %119 = vsyncadd [#allocation4], 0
      %s121 = sshll.u32 [#allocation8], 4
      %s122 = int_to_ptr.vmem [resolvable:$true] %s121
      %s123 = sshll.u32 %s3, 4
      %s124 = int_to_ptr.hbm [resolvable:$true] %s123
      %126 = dma.vmem_to_hbm [thread:$0]  %s122, 896, %s124, [#allocation4]
    $region29: #{tpu_custom_call.1} parent=1 // pred_fallthru
      _
    // Predicated region
    $region30: #{tpu_custom_call.1} parent=1 // pred_check
      _
    $region31: #{tpu_custom_call.1} parent=1 // pred_check_branch
      %128 = sbr.rel (0) target = $region33
    $region32: #{tpu_custom_call.1} parent=1 // pred_region
      %130 = dma.done [#allocation4], 896
    $region33: #{tpu_custom_call.1} parent=1 // pred_fallthru
      _
    %131 = vsyncpa [#allocation3], 1
    %132 = vsyncpa [#allocation6], 1
    %133 = vsyncpa [#allocation4], 1

</llo_original>
